<compile_context>
chip_gen: v7x
topology: tpu7x:2x2x1
jax: 0.10.0
libtpu: 0.0.40
codegen_flags: <defaults>
</compile_context>

<pallas_src>
import functools

import jax
import jax.numpy as jnp
from jax.experimental import pallas as pl
from jax.experimental.pallas import tpu as pltpu


def _embedding_gather_kernel(idx_smem_ref,   # scalar prefetch: (N_pad,) int32 in SMEM
                             idx_vmem_ref,   # (TN, 1) int32 tile (for the pad mask)
                             w_hbm_ref,      # (V, D) weight, HBM-resident
                             out_ref,        # (TN, D) output tile
                             rows_ref,       # VMEM scratch (TN, D)
                             copy_sems,      # DMA semaphores (TN,)
                             *, tn, vocab, padding_idx):
    base = pl.program_id(0) * tn

    # Issue all TN row gathers; keep every DMA in flight to hide HBM latency.
    copies = []
    for r in range(tn):                      # static unroll (tn is small)
        row = jnp.clip(idx_smem_ref[base + r], 0, vocab - 1)
        cp = pltpu.make_async_copy(
            w_hbm_ref.at[pl.ds(row, 1), :],
            rows_ref.at[pl.ds(r, 1), :],
            copy_sems.at[r],
        )
        cp.start()
        copies.append(cp)
    for cp in copies:
        cp.wait()

    # forward() semantics: (weight * padding_mask)[inputs]
    # -> zero any row whose index == padding_idx.  (TN,1) mask, one VPU pass.
    mask = (idx_vmem_ref[...] != padding_idx).astype(out_ref.dtype)   # (TN, 1)
    out_ref[...] = rows_ref[...] * mask                               # lane-dense store


def embedding_forward(inputs, weight, padding_idx, *, tn=8):
    """inputs: (seq_len, batch) int32; weight: (V, D) f32
       -> (seq_len, batch, D) f32"""
    seq_len, batch = inputs.shape
    v, d = weight.shape
    n = seq_len * batch

    idx_flat = inputs.reshape(n).astype(jnp.int32)
    n_pad = pl.cdiv(n, tn) * tn
    if n_pad != n:
        # Pad with padding_idx: valid index, and its output row is zeroed by
        # the mask anyway; padded rows are sliced off below.
        idx_flat = jnp.pad(idx_flat, (0, n_pad - n),
                           constant_values=padding_idx)
    idx_2d = idx_flat.reshape(n_pad, 1)

    kernel = functools.partial(_embedding_gather_kernel,
                               tn=tn, vocab=v, padding_idx=padding_idx)

    out_flat = pl.pallas_call(
        kernel,
        out_shape=jax.ShapeDtypeStruct((n_pad, d), weight.dtype),
        grid_spec=pltpu.PrefetchScalarGridSpec(
            num_scalar_prefetch=1,                 # idx_flat -> SMEM
            grid=(n_pad // tn,),
            in_specs=[
                pl.BlockSpec((tn, 1), lambda i, idx: (i, 0)),   # idx tile (mask)
                pl.BlockSpec(memory_space=pl.ANY),              # weight stays in HBM
            ],
            out_specs=pl.BlockSpec((tn, d), lambda i, idx: (i, 0)),
            scratch_shapes=[
                pltpu.VMEM((tn, d), weight.dtype),              # gathered rows
                pltpu.SemaphoreType.DMA((tn,)),                 # one sem per row DMA
            ],
        ),
        compiler_params=pltpu.CompilerParams(
            dimension_semantics=("parallel",),      # v7x: split rows across 2 TCs
        ),
    )(idx_flat, idx_2d, weight)

    return out_flat[:n].reshape(seq_len, batch, d)


if __name__ == "__main__":
    # Module config (small; D chosen as a multiple of 128 for lane-dense stores).
    num_embeddings = 64
    embedding_dim = 128
    padding_idx = 1
    seq_len, batch = 8, 2

    key = jax.random.PRNGKey(0)
    k_w, k_idx = jax.random.split(key)

    # nn.Parameter(torch.normal(0, 1, (V, D))) with the padding row zeroed.
    weight = jax.random.normal(k_w, (num_embeddings, embedding_dim),
                               dtype=jnp.float32)
    weight = weight.at[padding_idx].set(0.0)

    # Long tensor of indices of size (seq_len, batch_size); force one pad id.
    inputs = jax.random.randint(k_idx, (seq_len, batch), 0, num_embeddings,
                                dtype=jnp.int32)
    inputs = inputs.at[0, 0].set(padding_idx)

    out = embedding_forward(inputs, weight, padding_idx)
    out = jax.block_until_ready(out)

    # Reference: (weight * padding_mask)[inputs]  (exactly the module forward).
    pad_mask = (jnp.arange(num_embeddings) != padding_idx)[:, None]
    ref = (weight * pad_mask)[inputs]
    assert out.shape == (seq_len, batch, embedding_dim)
    assert jnp.allclose(out, ref, atol=1e-6), "mismatch vs reference"

    print("KERNEL_OK")
</pallas_src>

<mosaic_0001>
module attributes {stable_mosaic.version = 11 : i64} {
  func.func @_embedding_gather_kernel(%arg0: i32, %arg1: memref<16xi32, #tpu.memory_space<smem>>, %arg2: memref<8x1xi32, #tpu.memory_space<vmem>>, %arg3: memref<64x128xf32, #tpu.memory_space<any>>, %arg4: memref<8x128xf32, #tpu.memory_space<vmem>>, %arg5: memref<8x128xf32, #tpu.memory_space<vmem>>, %arg6: memref<8x!tpu.dma_semaphore, #tpu.memory_space<semaphore_mem>>) attributes {dimension_semantics = [#tpu.dimension_semantics<parallel>], iteration_bounds = array<i64: 2>, scalar_prefetch = 1 : i64, scratch_operands = 2 : i64, tpu.core_type = #tpu.core_type<tc>, window_params = [{transform_indices = @transform_0, window_bounds = array<i64: 8, 1>}, {}, {transform_indices = @transform_2, window_bounds = array<i64: 8, 128>}]} {
    %c8_i32 = arith.constant 8 : i32
    %0 = arith.muli %arg0, %c8_i32 : i32
    %c0_i32 = arith.constant 0 : i32
    %1 = arith.addi %0, %c0_i32 : i32
    %2 = arith.index_cast %1 : i32 to index
    %3 = memref.load %arg1[%2] : memref<16xi32, #tpu.memory_space<smem>>
    %c0_i32_0 = arith.constant 0 : i32
    %c63_i32 = arith.constant 63 : i32
    %4 = arith.maxsi %c0_i32_0, %3 : i32
    %5 = arith.minsi %c63_i32, %4 : i32
    %c0_i32_1 = arith.constant 0 : i32
    %c0_i32_2 = arith.constant 0 : i32
    %6 = tpu.memref_slice %arg3[%5, %c0_i32_2] : memref<64x128xf32, #tpu.memory_space<any>> -> memref<1x128xf32, #tpu.memory_space<any>>
    %c0_i32_3 = arith.constant 0 : i32
    %c0_i32_4 = arith.constant 0 : i32
    %7 = tpu.memref_slice %arg5[%c0_i32_3, %c0_i32_4] : memref<8x128xf32, #tpu.memory_space<vmem>> -> memref<1x128xf32, #tpu.memory_space<vmem>>
    %8 = tpu.memref_slice %arg6[%c0_i32_1] : memref<8x!tpu.dma_semaphore, #tpu.memory_space<semaphore_mem>> -> memref<1x!tpu.dma_semaphore, #tpu.memory_space<semaphore_mem>>
    %9 = tpu.memref_squeeze %8 : memref<1x!tpu.dma_semaphore, #tpu.memory_space<semaphore_mem>> -> memref<!tpu.dma_semaphore, #tpu.memory_space<semaphore_mem>>
    tpu.enqueue_dma source(%6 : memref<1x128xf32, #tpu.memory_space<any>>) target(%7 : memref<1x128xf32, #tpu.memory_space<vmem>>) target_semaphore(%9 : memref<!tpu.dma_semaphore, #tpu.memory_space<semaphore_mem>>)
    %c1_i32 = arith.constant 1 : i32
    %10 = arith.addi %0, %c1_i32 : i32
    %11 = arith.index_cast %10 : i32 to index
    %12 = memref.load %arg1[%11] : memref<16xi32, #tpu.memory_space<smem>>
    %c0_i32_5 = arith.constant 0 : i32
    %c63_i32_6 = arith.constant 63 : i32
    %13 = arith.maxsi %c0_i32_5, %12 : i32
    %14 = arith.minsi %c63_i32_6, %13 : i32
    %c1_i32_7 = arith.constant 1 : i32
    %c0_i32_8 = arith.constant 0 : i32
    %15 = tpu.memref_slice %arg3[%14, %c0_i32_8] : memref<64x128xf32, #tpu.memory_space<any>> -> memref<1x128xf32, #tpu.memory_space<any>>
    %c1_i32_9 = arith.constant 1 : i32
    %c0_i32_10 = arith.constant 0 : i32
    %16 = tpu.memref_slice %arg5[%c1_i32_9, %c0_i32_10] : memref<8x128xf32, #tpu.memory_space<vmem>> -> memref<1x128xf32, #tpu.memory_space<vmem>>
    %17 = tpu.memref_slice %arg6[%c1_i32_7] : memref<8x!tpu.dma_semaphore, #tpu.memory_space<semaphore_mem>> -> memref<1x!tpu.dma_semaphore, #tpu.memory_space<semaphore_mem>>
    %18 = tpu.memref_squeeze %17 : memref<1x!tpu.dma_semaphore, #tpu.memory_space<semaphore_mem>> -> memref<!tpu.dma_semaphore, #tpu.memory_space<semaphore_mem>>
    tpu.enqueue_dma source(%15 : memref<1x128xf32, #tpu.memory_space<any>>) target(%16 : memref<1x128xf32, #tpu.memory_space<vmem>>) target_semaphore(%18 : memref<!tpu.dma_semaphore, #tpu.memory_space<semaphore_mem>>)
    %c2_i32 = arith.constant 2 : i32
    %19 = arith.addi %0, %c2_i32 : i32
    %20 = arith.index_cast %19 : i32 to index
    %21 = memref.load %arg1[%20] : memref<16xi32, #tpu.memory_space<smem>>
    %c0_i32_11 = arith.constant 0 : i32
    %c63_i32_12 = arith.constant 63 : i32
    %22 = arith.maxsi %c0_i32_11, %21 : i32
    %23 = arith.minsi %c63_i32_12, %22 : i32
    %c2_i32_13 = arith.constant 2 : i32
    %c0_i32_14 = arith.constant 0 : i32
    %24 = tpu.memref_slice %arg3[%23, %c0_i32_14] : memref<64x128xf32, #tpu.memory_space<any>> -> memref<1x128xf32, #tpu.memory_space<any>>
    %c2_i32_15 = arith.constant 2 : i32
    %c0_i32_16 = arith.constant 0 : i32
    %25 = tpu.memref_slice %arg5[%c2_i32_15, %c0_i32_16] : memref<8x128xf32, #tpu.memory_space<vmem>> -> memref<1x128xf32, #tpu.memory_space<vmem>>
    %26 = tpu.memref_slice %arg6[%c2_i32_13] : memref<8x!tpu.dma_semaphore, #tpu.memory_space<semaphore_mem>> -> memref<1x!tpu.dma_semaphore, #tpu.memory_space<semaphore_mem>>
    %27 = tpu.memref_squeeze %26 : memref<1x!tpu.dma_semaphore, #tpu.memory_space<semaphore_mem>> -> memref<!tpu.dma_semaphore, #tpu.memory_space<semaphore_mem>>
    tpu.enqueue_dma source(%24 : memref<1x128xf32, #tpu.memory_space<any>>) target(%25 : memref<1x128xf32, #tpu.memory_space<vmem>>) target_semaphore(%27 : memref<!tpu.dma_semaphore, #tpu.memory_space<semaphore_mem>>)
    %c3_i32 = arith.constant 3 : i32
    %28 = arith.addi %0, %c3_i32 : i32
    %29 = arith.index_cast %28 : i32 to index
    %30 = memref.load %arg1[%29] : memref<16xi32, #tpu.memory_space<smem>>
    %c0_i32_17 = arith.constant 0 : i32
    %c63_i32_18 = arith.constant 63 : i32
    %31 = arith.maxsi %c0_i32_17, %30 : i32
    %32 = arith.minsi %c63_i32_18, %31 : i32
    %c3_i32_19 = arith.constant 3 : i32
    %c0_i32_20 = arith.constant 0 : i32
    %33 = tpu.memref_slice %arg3[%32, %c0_i32_20] : memref<64x128xf32, #tpu.memory_space<any>> -> memref<1x128xf32, #tpu.memory_space<any>>
    %c3_i32_21 = arith.constant 3 : i32
    %c0_i32_22 = arith.constant 0 : i32
    %34 = tpu.memref_slice %arg5[%c3_i32_21, %c0_i32_22] : memref<8x128xf32, #tpu.memory_space<vmem>> -> memref<1x128xf32, #tpu.memory_space<vmem>>
    %35 = tpu.memref_slice %arg6[%c3_i32_19] : memref<8x!tpu.dma_semaphore, #tpu.memory_space<semaphore_mem>> -> memref<1x!tpu.dma_semaphore, #tpu.memory_space<semaphore_mem>>
    %36 = tpu.memref_squeeze %35 : memref<1x!tpu.dma_semaphore, #tpu.memory_space<semaphore_mem>> -> memref<!tpu.dma_semaphore, #tpu.memory_space<semaphore_mem>>
    tpu.enqueue_dma source(%33 : memref<1x128xf32, #tpu.memory_space<any>>) target(%34 : memref<1x128xf32, #tpu.memory_space<vmem>>) target_semaphore(%36 : memref<!tpu.dma_semaphore, #tpu.memory_space<semaphore_mem>>)
    %c4_i32 = arith.constant 4 : i32
    %37 = arith.addi %0, %c4_i32 : i32
    %38 = arith.index_cast %37 : i32 to index
    %39 = memref.load %arg1[%38] : memref<16xi32, #tpu.memory_space<smem>>
    %c0_i32_23 = arith.constant 0 : i32
    %c63_i32_24 = arith.constant 63 : i32
    %40 = arith.maxsi %c0_i32_23, %39 : i32
    %41 = arith.minsi %c63_i32_24, %40 : i32
    %c4_i32_25 = arith.constant 4 : i32
    %c0_i32_26 = arith.constant 0 : i32
    %42 = tpu.memref_slice %arg3[%41, %c0_i32_26] : memref<64x128xf32, #tpu.memory_space<any>> -> memref<1x128xf32, #tpu.memory_space<any>>
    %c4_i32_27 = arith.constant 4 : i32
    %c0_i32_28 = arith.constant 0 : i32
    %43 = tpu.memref_slice %arg5[%c4_i32_27, %c0_i32_28] : memref<8x128xf32, #tpu.memory_space<vmem>> -> memref<1x128xf32, #tpu.memory_space<vmem>>
    %44 = tpu.memref_slice %arg6[%c4_i32_25] : memref<8x!tpu.dma_semaphore, #tpu.memory_space<semaphore_mem>> -> memref<1x!tpu.dma_semaphore, #tpu.memory_space<semaphore_mem>>
    %45 = tpu.memref_squeeze %44 : memref<1x!tpu.dma_semaphore, #tpu.memory_space<semaphore_mem>> -> memref<!tpu.dma_semaphore, #tpu.memory_space<semaphore_mem>>
    tpu.enqueue_dma source(%42 : memref<1x128xf32, #tpu.memory_space<any>>) target(%43 : memref<1x128xf32, #tpu.memory_space<vmem>>) target_semaphore(%45 : memref<!tpu.dma_semaphore, #tpu.memory_space<semaphore_mem>>)
    %c5_i32 = arith.constant 5 : i32
    %46 = arith.addi %0, %c5_i32 : i32
    %47 = arith.index_cast %46 : i32 to index
    %48 = memref.load %arg1[%47] : memref<16xi32, #tpu.memory_space<smem>>
    %c0_i32_29 = arith.constant 0 : i32
    %c63_i32_30 = arith.constant 63 : i32
    %49 = arith.maxsi %c0_i32_29, %48 : i32
    %50 = arith.minsi %c63_i32_30, %49 : i32
    %c5_i32_31 = arith.constant 5 : i32
    %c0_i32_32 = arith.constant 0 : i32
    %51 = tpu.memref_slice %arg3[%50, %c0_i32_32] : memref<64x128xf32, #tpu.memory_space<any>> -> memref<1x128xf32, #tpu.memory_space<any>>
    %c5_i32_33 = arith.constant 5 : i32
    %c0_i32_34 = arith.constant 0 : i32
    %52 = tpu.memref_slice %arg5[%c5_i32_33, %c0_i32_34] : memref<8x128xf32, #tpu.memory_space<vmem>> -> memref<1x128xf32, #tpu.memory_space<vmem>>
    %53 = tpu.memref_slice %arg6[%c5_i32_31] : memref<8x!tpu.dma_semaphore, #tpu.memory_space<semaphore_mem>> -> memref<1x!tpu.dma_semaphore, #tpu.memory_space<semaphore_mem>>
    %54 = tpu.memref_squeeze %53 : memref<1x!tpu.dma_semaphore, #tpu.memory_space<semaphore_mem>> -> memref<!tpu.dma_semaphore, #tpu.memory_space<semaphore_mem>>
    tpu.enqueue_dma source(%51 : memref<1x128xf32, #tpu.memory_space<any>>) target(%52 : memref<1x128xf32, #tpu.memory_space<vmem>>) target_semaphore(%54 : memref<!tpu.dma_semaphore, #tpu.memory_space<semaphore_mem>>)
    %c6_i32 = arith.constant 6 : i32
    %55 = arith.addi %0, %c6_i32 : i32
    %56 = arith.index_cast %55 : i32 to index
    %57 = memref.load %arg1[%56] : memref<16xi32, #tpu.memory_space<smem>>
    %c0_i32_35 = arith.constant 0 : i32
    %c63_i32_36 = arith.constant 63 : i32
    %58 = arith.maxsi %c0_i32_35, %57 : i32
    %59 = arith.minsi %c63_i32_36, %58 : i32
    %c6_i32_37 = arith.constant 6 : i32
    %c0_i32_38 = arith.constant 0 : i32
    %60 = tpu.memref_slice %arg3[%59, %c0_i32_38] : memref<64x128xf32, #tpu.memory_space<any>> -> memref<1x128xf32, #tpu.memory_space<any>>
    %c6_i32_39 = arith.constant 6 : i32
    %c0_i32_40 = arith.constant 0 : i32
    %61 = tpu.memref_slice %arg5[%c6_i32_39, %c0_i32_40] : memref<8x128xf32, #tpu.memory_space<vmem>> -> memref<1x128xf32, #tpu.memory_space<vmem>>
    %62 = tpu.memref_slice %arg6[%c6_i32_37] : memref<8x!tpu.dma_semaphore, #tpu.memory_space<semaphore_mem>> -> memref<1x!tpu.dma_semaphore, #tpu.memory_space<semaphore_mem>>
    %63 = tpu.memref_squeeze %62 : memref<1x!tpu.dma_semaphore, #tpu.memory_space<semaphore_mem>> -> memref<!tpu.dma_semaphore, #tpu.memory_space<semaphore_mem>>
    tpu.enqueue_dma source(%60 : memref<1x128xf32, #tpu.memory_space<any>>) target(%61 : memref<1x128xf32, #tpu.memory_space<vmem>>) target_semaphore(%63 : memref<!tpu.dma_semaphore, #tpu.memory_space<semaphore_mem>>)
    %c7_i32 = arith.constant 7 : i32
    %64 = arith.addi %0, %c7_i32 : i32
    %65 = arith.index_cast %64 : i32 to index
    %66 = memref.load %arg1[%65] : memref<16xi32, #tpu.memory_space<smem>>
    %c0_i32_41 = arith.constant 0 : i32
    %c63_i32_42 = arith.constant 63 : i32
    %67 = arith.maxsi %c0_i32_41, %66 : i32
    %68 = arith.minsi %c63_i32_42, %67 : i32
    %c7_i32_43 = arith.constant 7 : i32
    %c0_i32_44 = arith.constant 0 : i32
    %69 = tpu.memref_slice %arg3[%68, %c0_i32_44] : memref<64x128xf32, #tpu.memory_space<any>> -> memref<1x128xf32, #tpu.memory_space<any>>
    %c7_i32_45 = arith.constant 7 : i32
    %c0_i32_46 = arith.constant 0 : i32
    %70 = tpu.memref_slice %arg5[%c7_i32_45, %c0_i32_46] : memref<8x128xf32, #tpu.memory_space<vmem>> -> memref<1x128xf32, #tpu.memory_space<vmem>>
    %71 = tpu.memref_slice %arg6[%c7_i32_43] : memref<8x!tpu.dma_semaphore, #tpu.memory_space<semaphore_mem>> -> memref<1x!tpu.dma_semaphore, #tpu.memory_space<semaphore_mem>>
    %72 = tpu.memref_squeeze %71 : memref<1x!tpu.dma_semaphore, #tpu.memory_space<semaphore_mem>> -> memref<!tpu.dma_semaphore, #tpu.memory_space<semaphore_mem>>
    tpu.enqueue_dma source(%69 : memref<1x128xf32, #tpu.memory_space<any>>) target(%70 : memref<1x128xf32, #tpu.memory_space<vmem>>) target_semaphore(%72 : memref<!tpu.dma_semaphore, #tpu.memory_space<semaphore_mem>>)
    %c0_i32_47 = arith.constant 0 : i32
    %c0_i32_48 = arith.constant 0 : i32
    %73 = tpu.memref_slice %arg3[%5, %c0_i32_48] : memref<64x128xf32, #tpu.memory_space<any>> -> memref<1x128xf32, #tpu.memory_space<any>>
    %c0_i32_49 = arith.constant 0 : i32
    %c0_i32_50 = arith.constant 0 : i32
    %74 = tpu.memref_slice %arg5[%c0_i32_49, %c0_i32_50] : memref<8x128xf32, #tpu.memory_space<vmem>> -> memref<1x128xf32, #tpu.memory_space<vmem>>
    %75 = tpu.memref_slice %arg6[%c0_i32_47] : memref<8x!tpu.dma_semaphore, #tpu.memory_space<semaphore_mem>> -> memref<1x!tpu.dma_semaphore, #tpu.memory_space<semaphore_mem>>
    %76 = tpu.memref_squeeze %75 : memref<1x!tpu.dma_semaphore, #tpu.memory_space<semaphore_mem>> -> memref<!tpu.dma_semaphore, #tpu.memory_space<semaphore_mem>>
    tpu.wait_dma2 semaphore(%76 : memref<!tpu.dma_semaphore, #tpu.memory_space<semaphore_mem>>) src(%73 : memref<1x128xf32, #tpu.memory_space<any>>) dst(%74 : memref<1x128xf32, #tpu.memory_space<vmem>>)
    %c1_i32_51 = arith.constant 1 : i32
    %c0_i32_52 = arith.constant 0 : i32
    %77 = tpu.memref_slice %arg3[%14, %c0_i32_52] : memref<64x128xf32, #tpu.memory_space<any>> -> memref<1x128xf32, #tpu.memory_space<any>>
    %c1_i32_53 = arith.constant 1 : i32
    %c0_i32_54 = arith.constant 0 : i32
    %78 = tpu.memref_slice %arg5[%c1_i32_53, %c0_i32_54] : memref<8x128xf32, #tpu.memory_space<vmem>> -> memref<1x128xf32, #tpu.memory_space<vmem>>
    %79 = tpu.memref_slice %arg6[%c1_i32_51] : memref<8x!tpu.dma_semaphore, #tpu.memory_space<semaphore_mem>> -> memref<1x!tpu.dma_semaphore, #tpu.memory_space<semaphore_mem>>
    %80 = tpu.memref_squeeze %79 : memref<1x!tpu.dma_semaphore, #tpu.memory_space<semaphore_mem>> -> memref<!tpu.dma_semaphore, #tpu.memory_space<semaphore_mem>>
    tpu.wait_dma2 semaphore(%80 : memref<!tpu.dma_semaphore, #tpu.memory_space<semaphore_mem>>) src(%77 : memref<1x128xf32, #tpu.memory_space<any>>) dst(%78 : memref<1x128xf32, #tpu.memory_space<vmem>>)
    %c2_i32_55 = arith.constant 2 : i32
    %c0_i32_56 = arith.constant 0 : i32
    %81 = tpu.memref_slice %arg3[%23, %c0_i32_56] : memref<64x128xf32, #tpu.memory_space<any>> -> memref<1x128xf32, #tpu.memory_space<any>>
    %c2_i32_57 = arith.constant 2 : i32
    %c0_i32_58 = arith.constant 0 : i32
    %82 = tpu.memref_slice %arg5[%c2_i32_57, %c0_i32_58] : memref<8x128xf32, #tpu.memory_space<vmem>> -> memref<1x128xf32, #tpu.memory_space<vmem>>
    %83 = tpu.memref_slice %arg6[%c2_i32_55] : memref<8x!tpu.dma_semaphore, #tpu.memory_space<semaphore_mem>> -> memref<1x!tpu.dma_semaphore, #tpu.memory_space<semaphore_mem>>
    %84 = tpu.memref_squeeze %83 : memref<1x!tpu.dma_semaphore, #tpu.memory_space<semaphore_mem>> -> memref<!tpu.dma_semaphore, #tpu.memory_space<semaphore_mem>>
    tpu.wait_dma2 semaphore(%84 : memref<!tpu.dma_semaphore, #tpu.memory_space<semaphore_mem>>) src(%81 : memref<1x128xf32, #tpu.memory_space<any>>) dst(%82 : memref<1x128xf32, #tpu.memory_space<vmem>>)
    %c3_i32_59 = arith.constant 3 : i32
    %c0_i32_60 = arith.constant 0 : i32
    %85 = tpu.memref_slice %arg3[%32, %c0_i32_60] : memref<64x128xf32, #tpu.memory_space<any>> -> memref<1x128xf32, #tpu.memory_space<any>>
    %c3_i32_61 = arith.constant 3 : i32
    %c0_i32_62 = arith.constant 0 : i32
    %86 = tpu.memref_slice %arg5[%c3_i32_61, %c0_i32_62] : memref<8x128xf32, #tpu.memory_space<vmem>> -> memref<1x128xf32, #tpu.memory_space<vmem>>
    %87 = tpu.memref_slice %arg6[%c3_i32_59] : memref<8x!tpu.dma_semaphore, #tpu.memory_space<semaphore_mem>> -> memref<1x!tpu.dma_semaphore, #tpu.memory_space<semaphore_mem>>
    %88 = tpu.memref_squeeze %87 : memref<1x!tpu.dma_semaphore, #tpu.memory_space<semaphore_mem>> -> memref<!tpu.dma_semaphore, #tpu.memory_space<semaphore_mem>>
    tpu.wait_dma2 semaphore(%88 : memref<!tpu.dma_semaphore, #tpu.memory_space<semaphore_mem>>) src(%85 : memref<1x128xf32, #tpu.memory_space<any>>) dst(%86 : memref<1x128xf32, #tpu.memory_space<vmem>>)
    %c4_i32_63 = arith.constant 4 : i32
    %c0_i32_64 = arith.constant 0 : i32
    %89 = tpu.memref_slice %arg3[%41, %c0_i32_64] : memref<64x128xf32, #tpu.memory_space<any>> -> memref<1x128xf32, #tpu.memory_space<any>>
    %c4_i32_65 = arith.constant 4 : i32
    %c0_i32_66 = arith.constant 0 : i32
    %90 = tpu.memref_slice %arg5[%c4_i32_65, %c0_i32_66] : memref<8x128xf32, #tpu.memory_space<vmem>> -> memref<1x128xf32, #tpu.memory_space<vmem>>
    %91 = tpu.memref_slice %arg6[%c4_i32_63] : memref<8x!tpu.dma_semaphore, #tpu.memory_space<semaphore_mem>> -> memref<1x!tpu.dma_semaphore, #tpu.memory_space<semaphore_mem>>
    %92 = tpu.memref_squeeze %91 : memref<1x!tpu.dma_semaphore, #tpu.memory_space<semaphore_mem>> -> memref<!tpu.dma_semaphore, #tpu.memory_space<semaphore_mem>>
    tpu.wait_dma2 semaphore(%92 : memref<!tpu.dma_semaphore, #tpu.memory_space<semaphore_mem>>) src(%89 : memref<1x128xf32, #tpu.memory_space<any>>) dst(%90 : memref<1x128xf32, #tpu.memory_space<vmem>>)
    %c5_i32_67 = arith.constant 5 : i32
    %c0_i32_68 = arith.constant 0 : i32
    %93 = tpu.memref_slice %arg3[%50, %c0_i32_68] : memref<64x128xf32, #tpu.memory_space<any>> -> memref<1x128xf32, #tpu.memory_space<any>>
    %c5_i32_69 = arith.constant 5 : i32
    %c0_i32_70 = arith.constant 0 : i32
    %94 = tpu.memref_slice %arg5[%c5_i32_69, %c0_i32_70] : memref<8x128xf32, #tpu.memory_space<vmem>> -> memref<1x128xf32, #tpu.memory_space<vmem>>
    %95 = tpu.memref_slice %arg6[%c5_i32_67] : memref<8x!tpu.dma_semaphore, #tpu.memory_space<semaphore_mem>> -> memref<1x!tpu.dma_semaphore, #tpu.memory_space<semaphore_mem>>
    %96 = tpu.memref_squeeze %95 : memref<1x!tpu.dma_semaphore, #tpu.memory_space<semaphore_mem>> -> memref<!tpu.dma_semaphore, #tpu.memory_space<semaphore_mem>>
    tpu.wait_dma2 semaphore(%96 : memref<!tpu.dma_semaphore, #tpu.memory_space<semaphore_mem>>) src(%93 : memref<1x128xf32, #tpu.memory_space<any>>) dst(%94 : memref<1x128xf32, #tpu.memory_space<vmem>>)
    %c6_i32_71 = arith.constant 6 : i32
    %c0_i32_72 = arith.constant 0 : i32
    %97 = tpu.memref_slice %arg3[%59, %c0_i32_72] : memref<64x128xf32, #tpu.memory_space<any>> -> memref<1x128xf32, #tpu.memory_space<any>>
    %c6_i32_73 = arith.constant 6 : i32
    %c0_i32_74 = arith.constant 0 : i32
    %98 = tpu.memref_slice %arg5[%c6_i32_73, %c0_i32_74] : memref<8x128xf32, #tpu.memory_space<vmem>> -> memref<1x128xf32, #tpu.memory_space<vmem>>
    %99 = tpu.memref_slice %arg6[%c6_i32_71] : memref<8x!tpu.dma_semaphore, #tpu.memory_space<semaphore_mem>> -> memref<1x!tpu.dma_semaphore, #tpu.memory_space<semaphore_mem>>
    %100 = tpu.memref_squeeze %99 : memref<1x!tpu.dma_semaphore, #tpu.memory_space<semaphore_mem>> -> memref<!tpu.dma_semaphore, #tpu.memory_space<semaphore_mem>>
    tpu.wait_dma2 semaphore(%100 : memref<!tpu.dma_semaphore, #tpu.memory_space<semaphore_mem>>) src(%97 : memref<1x128xf32, #tpu.memory_space<any>>) dst(%98 : memref<1x128xf32, #tpu.memory_space<vmem>>)
    %c7_i32_75 = arith.constant 7 : i32
    %c0_i32_76 = arith.constant 0 : i32
    %101 = tpu.memref_slice %arg3[%68, %c0_i32_76] : memref<64x128xf32, #tpu.memory_space<any>> -> memref<1x128xf32, #tpu.memory_space<any>>
    %c7_i32_77 = arith.constant 7 : i32
    %c0_i32_78 = arith.constant 0 : i32
    %102 = tpu.memref_slice %arg5[%c7_i32_77, %c0_i32_78] : memref<8x128xf32, #tpu.memory_space<vmem>> -> memref<1x128xf32, #tpu.memory_space<vmem>>
    %103 = tpu.memref_slice %arg6[%c7_i32_75] : memref<8x!tpu.dma_semaphore, #tpu.memory_space<semaphore_mem>> -> memref<1x!tpu.dma_semaphore, #tpu.memory_space<semaphore_mem>>
    %104 = tpu.memref_squeeze %103 : memref<1x!tpu.dma_semaphore, #tpu.memory_space<semaphore_mem>> -> memref<!tpu.dma_semaphore, #tpu.memory_space<semaphore_mem>>
    tpu.wait_dma2 semaphore(%104 : memref<!tpu.dma_semaphore, #tpu.memory_space<semaphore_mem>>) src(%101 : memref<1x128xf32, #tpu.memory_space<any>>) dst(%102 : memref<1x128xf32, #tpu.memory_space<vmem>>)
    %c0 = arith.constant 0 : index
    %c0_79 = arith.constant 0 : index
    %105 = vector.load %arg2[%c0, %c0_79] : memref<8x1xi32, #tpu.memory_space<vmem>>, vector<8x1xi32>
    %c1_i32_80 = arith.constant 1 : i32
    %106 = vector.broadcast %c1_i32_80 : i32 to vector<8x1xi32>
    %107 = arith.cmpi ne, %105, %106 : vector<8x1xi32>
    %108 = arith.extui %107 : vector<8x1xi1> to vector<8x1xi32>
    %109 = arith.sitofp %108 : vector<8x1xi32> to vector<8x1xf32>
    %c0_81 = arith.constant 0 : index
    %c0_82 = arith.constant 0 : index
    %110 = vector.load %arg5[%c0_81, %c0_82] : memref<8x128xf32, #tpu.memory_space<vmem>>, vector<8x128xf32>
    %111 = vector.broadcast %109 : vector<8x1xf32> to vector<8x128xf32>
    %112 = arith.mulf %110, %111 : vector<8x128xf32>
    %c0_83 = arith.constant 0 : index
    %c0_84 = arith.constant 0 : index
    %113 = vector.load %arg4[%c0_83, %c0_84] : memref<8x128xf32, #tpu.memory_space<vmem>>, vector<8x128xf32>
    tpu.vector_store %arg4[%c0_83, %c0_84], %112 {strides = array<i32>} : memref<8x128xf32, #tpu.memory_space<vmem>>, vector<8x128xf32>,
    return
  }
  func.func @transform_0(%arg0: i32, %arg1: memref<16xi32, #tpu.memory_space<smem>>) -> (i32, i32) {
    %c0_i32 = arith.constant 0 : i32
    %c0_i32_0 = arith.constant 0 : i32
    return %arg0, %c0_i32 : i32, i32
  }
  func.func @transform_2(%arg0: i32, %arg1: memref<16xi32, #tpu.memory_space<smem>>) -> (i32, i32) {
    %c0_i32 = arith.constant 0 : i32
    %c0_i32_0 = arith.constant 0 : i32
    return %arg0, %c0_i32 : i32, i32
  }
}

</mosaic_0001>

<llo_original>
// kernel: tpu_custom_call.1
$region0: #{tpu_custom_call.1}
  #allocation0 [shape = 'u32[]', space=smem, size = 0x4, offset = 0x4, fixed_abs, tag = 'smem constant byte address 0x4 - core index']
  #allocation1 [shape = 'u32[144,128]{1,0:T(1,128)}', space=vmem, size = 0x12000, scoped, tag = 'internal scratch']
  #allocation2 [shape = 'f32[8,128]{1,0:T(8,128)}', space=vmem, size = 0x1000, scoped, tag = 'scratch operand']
  #allocation3 [shape = 's32[8]{0}', space=sflag, size = 0x20, scoped, tag = 'scratch operand']
  #allocation4 [shape = 's32[1]{0}', space=sflag, size = 0x4, scoped, tag = 'scoped memory for tpu_custom_call.1']
  #allocation5 [shape = 'u8[512]{0}', space=smem, size = 0x200, scoped, tag = 'prefetched SMEM operand 0']
  #allocation8 [shape = 's32[]', space=sflag, size = 0x4, offset = 0, fixed_abs, tag = 'sflag constant byte address 0x0 - dummy sync flag']
  #allocation9 [shape = 's32[]', space=sflag, size = 0x4, offset = 0, fixed_abs, tag = 'sflag constant byte address 0x0 - dummy sync flag']
  #allocation10 [shape = 'u32[]', space=smem, size = 0x4, offset = 0x44, fixed_abs, tag = 'smem constant byte address 0x44 - assertion arg 0']
  #allocation11 [shape = 'u32[]', space=smem, size = 0x4, offset = 0x48, fixed_abs, tag = 'smem constant byte address 0x48 - assertion arg 1']
  #allocation12 [shape = 's32[]', space=sflag, size = 0x4, offset = 0, fixed_abs, tag = 'sflag constant byte address 0x0 - dummy sync flag']
  #allocation13 [shape = 's32[]', space=sflag, size = 0x4, offset = 0, fixed_abs, tag = 'sflag constant byte address 0x0 - dummy sync flag']
  #allocation14 [shape = 's32[]', space=sflag, size = 0x4, offset = 0, fixed_abs, tag = 'sflag constant byte address 0x0 - dummy sync flag']
  #allocation15 [shape = 's32[]', space=sflag, size = 0x4, offset = 0, fixed_abs, tag = 'sflag constant byte address 0x0 - dummy sync flag']
  #allocation16 [shape = 's32[]', space=sflag, size = 0x4, offset = 0, fixed_abs, tag = 'sflag constant byte address 0x0 - dummy sync flag']
  #allocation17 [shape = 's32[]', space=sflag, size = 0x4, offset = 0, fixed_abs, tag = 'sflag constant byte address 0x0 - dummy sync flag']
  #allocation18 [shape = 's32[]', space=sflag, size = 0x4, offset = 0, fixed_abs, tag = 'sflag constant byte address 0x0 - dummy sync flag']
  #allocation19 [shape = 's32[]', space=sflag, size = 0x4, offset = 0, fixed_abs, tag = 'sflag constant byte address 0x0 - dummy sync flag']
  #allocation20 [shape = 's32[]', space=sflag, size = 0x4, offset = 0, fixed_abs, tag = 'sflag constant byte address 0x0 - dummy sync flag']
  #allocation21 [shape = 's32[]', space=sflag, size = 0x4, offset = 0, fixed_abs, tag = 'sflag constant byte address 0x0 - dummy sync flag']
  #allocation22 [shape = 's32[]', space=sflag, size = 0x4, offset = 0, fixed_abs, tag = 'sflag constant byte address 0x0 - dummy sync flag']
  #allocation23 [shape = 's32[]', space=sflag, size = 0x4, offset = 0, fixed_abs, tag = 'sflag constant byte address 0x0 - dummy sync flag']
  #allocation24 [shape = 's32[]', space=sflag, size = 0x4, offset = 0, fixed_abs, tag = 'sflag constant byte address 0x0 - dummy sync flag']
  #allocation25 [shape = 's32[]', space=sflag, size = 0x4, offset = 0, fixed_abs, tag = 'sflag constant byte address 0x0 - dummy sync flag']
  %s0 = inlined_call_operand.vmem [shape: s32[16], index: 0, kind: input, shape index: {}]
  %s1 = inlined_call_operand.vmem [shape: s32[16,1], index: 1, kind: input, shape index: {}]
  %s2 = inlined_call_operand.hbm [shape: f32[64,128], index: 2, kind: input, shape index: {}]
  %s3 = inlined_call_operand.hbm [shape: f32[16,128], index: 3, kind: output, shape index: {}]
  %s4 = sld [smem:[#allocation0]]
  $region69: #{tpu_custom_call.1} parent=0
    _
  %s6 = ssub.s32 1, %s4
  %s7 = scalar_select 0, %s6, %s4
  %s8 = sshll.u32 %s0, 4
  %s9 = int_to_ptr.vmem [resolvable:$true] %s8
  %11 = dma.vmem_to_smem %s9, 16, [#allocation5], [#allocation4]
  %12 = dma.done [#allocation4], 16
  %13 = sfence
  $region1: #{tpu_custom_call.1} parent=0
    #allocation6 [shape = 'u8[8192]{0}', space=vmem, size = 0x2000, scoped, tag = 'output window, operand 0']
    #allocation7 [shape = 's32[2]{0}', space=sflag, size = 0x8, scoped, tag = 'scoped memory for tpu_custom_call.1']
    %14 = vsyncpa [#allocation7], 0
    %s15 = scalar_lea.sflag [#allocation7], 1
    %16 = vsyncpa %s15, 0
    loop: start=0, step=1, limit=4
    $region2: #{tpu_custom_call.1} parent=1 // loop_pre_header
      _
    $region3: #{tpu_custom_call.1} parent=1 // loop_header
      %s18 = sphi 0, %s22
      %p19 = scmp.ge.s32.totalorder %s18, 4
      %s28 = sphi 0, %s30
      %s31 = sphi 0, %s28
      %s32 = sphi 0, %s31
      %s48 = sphi 0, %s32
      %s54 = sphi 0, %s56
      %s57 = sphi 0, %s54
      %s58 = sphi 0, %s57
      %s74 = sphi 0, %s58
    $region4: #{tpu_custom_call.1} parent=1 // loop_header_branch
      %21 = sbr.rel (%p19) target = $region8
    $region5: #{tpu_custom_call.1} parent=1 // loop_body
      %s23 = ssub.s32 %s18, 1
      %s24 = ssub.s32 %s18, 2
      %s25 = sadd.s32 %s18, 1
      %s26 = ssub.s32 %s18, %s25
      %p27 = scmp.eq.s32.totalorder %s26, 0
      %s29 = sadd.s32 %s28, 1
      %s30 = scalar_select %p27, %s28, %s29
      %p33 = pneg %p27
      %p34 = scmp.eq.s32.totalorder %s18, 1
      %p35 = por %p33, %p34
      %p36 = scmp.ne.s32.totalorder %s28, %s31
      %p37 = scmp.eq.s32.totalorder %s18, 0
      %p38 = por %p36, %p37
      %p39 = scmp.ne.s32.totalorder %s28, %s31
      %p40 = scmp.eq.s32.totalorder %s23, 1
      %p41 = por %p39, %p40
      %p42 = scmp.ne.s32.totalorder %s31, %s32
      %p43 = scmp.eq.s32.totalorder %s23, 0
      %p44 = por %p42, %p43
      %p45 = scmp.ne.s32.totalorder %s31, %s32
      %p46 = scmp.eq.s32.totalorder %s24, 1
      %p47 = por %p45, %p46
      %p49 = scmp.ne.s32.totalorder %s32, %s48
      %p50 = scmp.eq.s32.totalorder %s24, 0
      %p51 = por %p49, %p50
      %s52 = ssub.s32 %s18, %s25
      %p53 = scmp.eq.s32.totalorder %s52, 0
      %s55 = sadd.s32 %s54, 1
      %s56 = scalar_select %p53, %s54, %s55
      %p59 = pneg %p53
      %p60 = scmp.eq.s32.totalorder %s18, 1
      %p61 = por %p59, %p60
      %p62 = scmp.ne.s32.totalorder %s54, %s57
      %p63 = scmp.eq.s32.totalorder %s18, 0
      %p64 = por %p62, %p63
      %p65 = scmp.ne.s32.totalorder %s54, %s57
      %p66 = scmp.eq.s32.totalorder %s23, 1
      %p67 = por %p65, %p66
      %p68 = scmp.ne.s32.totalorder %s57, %s58
      %p69 = scmp.eq.s32.totalorder %s23, 0
      %p70 = por %p68, %p69
      %p71 = scmp.ne.s32.totalorder %s57, %s58
      %p72 = scmp.eq.s32.totalorder %s24, 1
      %p73 = por %p71, %p72
      %p75 = scmp.ne.s32.totalorder %s58, %s74
      %p76 = scmp.eq.s32.totalorder %s24, 0
      %p77 = por %p75, %p76
      %p78 = scmp.le.s32.totalorder 1, %s18
      %p79 = scmp.lt.s32.totalorder %s18, 3
      %p80 = pnand %p78, %p79
      %p81 = pneg %p80
      // Predicated region
      $region9: #{tpu_custom_call.1} parent=5 // pred_check
        _
      $region10: #{tpu_custom_call.1} parent=5 // pred_check_branch
        %83 = sbr.rel (%p80) target = $region12
      $region11: #{tpu_custom_call.1} parent=5 // pred_region
        %s84 = ssub.s32 %s18, 1
      $region12: #{tpu_custom_call.1} parent=5 // pred_fallthru
        _
      %p85 = scmp.lt.s32.totalorder %s18, 2
      // Predicated region
      $region13: #{tpu_custom_call.1} parent=5 // pred_check
        %p86 = pneg %p85
      $region14: #{tpu_custom_call.1} parent=5 // pred_check_branch
        %88 = sbr.rel (%p86) target = $region16
      $region15: #{tpu_custom_call.1} parent=5 // pred_region
        // Predicated region
        $region17: #{tpu_custom_call.1} parent=15 // pred_check
          %p89 = pneg %p38
        $region18: #{tpu_custom_call.1} parent=15 // pred_check_branch
          %91 = sbr.rel (%p89) target = $region20
        $region19: #{tpu_custom_call.1} parent=15 // pred_region
          %p92 = scmp.lt.s32.totalorder %s18, 1
          %s93 = scalar_select %p92, %s18, 1
          %s94 = smul.addr %s93, 8
          %s95 = scalar_lea.vmem %s1, %s94
        $region20: #{tpu_custom_call.1} parent=15 // pred_fallthru
          _
      $region16: #{tpu_custom_call.1} parent=5 // pred_fallthru
        _
      %p96 = scmp.le.s32.totalorder 1, %s18
      %p97 = scmp.lt.s32.totalorder %s18, 3
      %p98 = pnand %p96, %p97
      %p99 = pneg %p98
      // Predicated region
      $region21: #{tpu_custom_call.1} parent=5 // pred_check
        _
      $region22: #{tpu_custom_call.1} parent=5 // pred_check_branch
        %101 = sbr.rel (%p98) target = $region24
      $region23: #{tpu_custom_call.1} parent=5 // pred_region
        %s102 = ssub.s32 %s18, 1
        %p103 = scmp.lt.s32.totalorder %s23, 1
        %s104 = scalar_select %p103, %s23, 1
        %s105 = smul.addr %s104, 8
        %s106 = scalar_lea.vmem %s1, %s105
        %p107 = pneg %p44
        %p108 = pneg %p41
        %p109 = pneg %p70
        %p110 = pneg %p67
        %s111 = sand.u32 %s57, 1
        %s112 = scalar_lea.sflag [#allocation7], %s111
        %s113 = sand.u32 %s57, 1
        %s114 = smul.addr %s113, 8
        %s115 = scalar_lea.vmem [#allocation6], %s114
        %p116 = scmp.lt.s32.totalorder %s23, 1
        %s117 = scalar_select %p116, %s23, 1
        %s118 = smul.addr %s117, 8
        %s119 = scalar_lea.vmem %s1, %s118
        %s120 = smul.u32 %s23, 8
        %s121 = sld [smem:[#allocation5 + %s120]]
        %p122 = scmp.gt.s32.totalorder %s121, 0
        %s123 = scalar_select %p122, %s121, 0
        %p124 = scmp.lt.s32.totalorder %s123, 63
        %s125 = scalar_select %p124, %s123, 63
        %s126 = smul.addr %s125, 16
        %s127 = scalar_lea.hbm %s2, %s126
        // Predicated region
        $region25: #{tpu_custom_call.1} parent=23 // pred_check
          _
        $region26: #{tpu_custom_call.1} parent=23 // pred_check_branch
          %129 = sbr.rel target = $region28
        $region27: #{tpu_custom_call.1} parent=23 // pred_region
          %130 = sst [smem:[#allocation10]] [#allocation9]
          %131 = sst [smem:[#allocation11]] [#allocation8]
        $region28: #{tpu_custom_call.1} parent=23 // pred_fallthru
          _
        %133 = shalt.err (0)
        %s135 = sshll.u32 [#allocation2], 4
        %s136 = int_to_ptr.vmem [resolvable:$true] %s135
        %138 = dma.hbm_to_vmem [thread:$0]  %s127, 16, %s136, [#allocation3]
        %s139 = sadd.s32 %s120, 1
        %s140 = sld [smem:[#allocation5 + %s139]]
        %p141 = scmp.gt.s32.totalorder %s140, 0
        %s142 = scalar_select %p141, %s140, 0
        %p143 = scmp.lt.s32.totalorder %s142, 63
        %s144 = scalar_select %p143, %s142, 63
        %s145 = smul.addr %s144, 16
        %s146 = scalar_lea.hbm %s2, %s145
        %s147 = scalar_lea.vmem [#allocation2], 1
        %s148 = scalar_lea.sflag [#allocation3], 1
        // Predicated region
        $region29: #{tpu_custom_call.1} parent=23 // pred_check
          _
        $region30: #{tpu_custom_call.1} parent=23 // pred_check_branch
          %150 = sbr.rel target = $region32
        $region31: #{tpu_custom_call.1} parent=23 // pred_region
          %151 = sst [smem:[#allocation10]] [#allocation13]
          %152 = sst [smem:[#allocation11]] [#allocation12]
        $region32: #{tpu_custom_call.1} parent=23 // pred_fallthru
          _
        %154 = shalt.err (0)
        %s156 = sshll.u32 %s147, 4
        %s157 = int_to_ptr.vmem [resolvable:$true] %s156
        %159 = dma.hbm_to_vmem [thread:$0]  %s146, 16, %s157, %s148
        %s160 = sadd.s32 %s120, 2
        %s161 = sld [smem:[#allocation5 + %s160]]
        %p162 = scmp.gt.s32.totalorder %s161, 0
        %s163 = scalar_select %p162, %s161, 0
        %p164 = scmp.lt.s32.totalorder %s163, 63
        %s165 = scalar_select %p164, %s163, 63
        %s166 = smul.addr %s165, 16
        %s167 = scalar_lea.hbm %s2, %s166
        %s168 = scalar_lea.vmem [#allocation2], 2
        %s169 = scalar_lea.sflag [#allocation3], 2
        // Predicated region
        $region33: #{tpu_custom_call.1} parent=23 // pred_check
          _
        $region34: #{tpu_custom_call.1} parent=23 // pred_check_branch
          %171 = sbr.rel target = $region36
        $region35: #{tpu_custom_call.1} parent=23 // pred_region
          %172 = sst [smem:[#allocation10]] [#allocation15]
          %173 = sst [smem:[#allocation11]] [#allocation14]
        $region36: #{tpu_custom_call.1} parent=23 // pred_fallthru
          _
        %175 = shalt.err (0)
        %s177 = sshll.u32 %s168, 4
        %s178 = int_to_ptr.vmem [resolvable:$true] %s177
        %180 = dma.hbm_to_vmem [thread:$0]  %s167, 16, %s178, %s169
        %s181 = sadd.s32 %s120, 3
        %s182 = sld [smem:[#allocation5 + %s181]]
        %p183 = scmp.gt.s32.totalorder %s182, 0
        %s184 = scalar_select %p183, %s182, 0
        %p185 = scmp.lt.s32.totalorder %s184, 63
        %s186 = scalar_select %p185, %s184, 63
        %s187 = smul.addr %s186, 16
        %s188 = scalar_lea.hbm %s2, %s187
        %s189 = scalar_lea.vmem [#allocation2], 3
        %s190 = scalar_lea.sflag [#allocation3], 3
        // Predicated region
        $region37: #{tpu_custom_call.1} parent=23 // pred_check
          _
        $region38: #{tpu_custom_call.1} parent=23 // pred_check_branch
          %192 = sbr.rel target = $region40
        $region39: #{tpu_custom_call.1} parent=23 // pred_region
          %193 = sst [smem:[#allocation10]] [#allocation17]
          %194 = sst [smem:[#allocation11]] [#allocation16]
        $region40: #{tpu_custom_call.1} parent=23 // pred_fallthru
          _
        %196 = shalt.err (0)
        %s198 = sshll.u32 %s189, 4
        %s199 = int_to_ptr.vmem [resolvable:$true] %s198
        %201 = dma.hbm_to_vmem [thread:$0]  %s188, 16, %s199, %s190
        %s202 = sadd.s32 %s120, 4
        %s203 = sld [smem:[#allocation5 + %s202]]
        %p204 = scmp.gt.s32.totalorder %s203, 0
        %s205 = scalar_select %p204, %s203, 0
        %p206 = scmp.lt.s32.totalorder %s205, 63
        %s207 = scalar_select %p206, %s205, 63
        %s208 = smul.addr %s207, 16
        %s209 = scalar_lea.hbm %s2, %s208
        %s210 = scalar_lea.vmem [#allocation2], 4
        %s211 = scalar_lea.sflag [#allocation3], 4
        // Predicated region
        $region41: #{tpu_custom_call.1} parent=23 // pred_check
          _
        $region42: #{tpu_custom_call.1} parent=23 // pred_check_branch
          %213 = sbr.rel target = $region44
        $region43: #{tpu_custom_call.1} parent=23 // pred_region
          %214 = sst [smem:[#allocation10]] [#allocation19]
          %215 = sst [smem:[#allocation11]] [#allocation18]
        $region44: #{tpu_custom_call.1} parent=23 // pred_fallthru
          _
        %217 = shalt.err (0)
        %s219 = sshll.u32 %s210, 4
        %s220 = int_to_ptr.vmem [resolvable:$true] %s219
        %222 = dma.hbm_to_vmem [thread:$0]  %s209, 16, %s220, %s211
        %s223 = sadd.s32 %s120, 5
        %s224 = sld [smem:[#allocation5 + %s223]]
        %p225 = scmp.gt.s32.totalorder %s224, 0
        %s226 = scalar_select %p225, %s224, 0
        %p227 = scmp.lt.s32.totalorder %s226, 63
        %s228 = scalar_select %p227, %s226, 63
        %s229 = smul.addr %s228, 16
        %s230 = scalar_lea.hbm %s2, %s229
        %s231 = scalar_lea.vmem [#allocation2], 5
        %s232 = scalar_lea.sflag [#allocation3], 5
        // Predicated region
        $region45: #{tpu_custom_call.1} parent=23 // pred_check
          _
        $region46: #{tpu_custom_call.1} parent=23 // pred_check_branch
          %234 = sbr.rel target = $region48
        $region47: #{tpu_custom_call.1} parent=23 // pred_region
          %235 = sst [smem:[#allocation10]] [#allocation21]
          %236 = sst [smem:[#allocation11]] [#allocation20]
        $region48: #{tpu_custom_call.1} parent=23 // pred_fallthru
          _
        %238 = shalt.err (0)
        %s240 = sshll.u32 %s231, 4
        %s241 = int_to_ptr.vmem [resolvable:$true] %s240
        %243 = dma.hbm_to_vmem [thread:$0]  %s230, 16, %s241, %s232
        %s244 = sadd.s32 %s120, 6
        %s245 = sld [smem:[#allocation5 + %s244]]
        %p246 = scmp.gt.s32.totalorder %s245, 0
        %s247 = scalar_select %p246, %s245, 0
        %p248 = scmp.lt.s32.totalorder %s247, 63
        %s249 = scalar_select %p248, %s247, 63
        %s250 = smul.addr %s249, 16
        %s251 = scalar_lea.hbm %s2, %s250
        %s252 = scalar_lea.vmem [#allocation2], 6
        %s253 = scalar_lea.sflag [#allocation3], 6
        // Predicated region
        $region49: #{tpu_custom_call.1} parent=23 // pred_check
          _
        $region50: #{tpu_custom_call.1} parent=23 // pred_check_branch
          %255 = sbr.rel target = $region52
        $region51: #{tpu_custom_call.1} parent=23 // pred_region
          %256 = sst [smem:[#allocation10]] [#allocation23]
          %257 = sst [smem:[#allocation11]] [#allocation22]
        $region52: #{tpu_custom_call.1} parent=23 // pred_fallthru
          _
        %259 = shalt.err (0)
        %s261 = sshll.u32 %s252, 4
        %s262 = int_to_ptr.vmem [resolvable:$true] %s261
        %264 = dma.hbm_to_vmem [thread:$0]  %s251, 16, %s262, %s253
        %s265 = sadd.s32 %s120, 7
        %s266 = sld [smem:[#allocation5 + %s265]]
        %p267 = scmp.gt.s32.totalorder %s266, 0
        %s268 = scalar_select %p267, %s266, 0
        %p269 = scmp.lt.s32.totalorder %s268, 63
        %s270 = scalar_select %p269, %s268, 63
        %s271 = smul.addr %s270, 16
        %s272 = scalar_lea.hbm %s2, %s271
        %s273 = scalar_lea.vmem [#allocation2], 7
        %s274 = scalar_lea.sflag [#allocation3], 7
        // Predicated region
        $region53: #{tpu_custom_call.1} parent=23 // pred_check
          _
        $region54: #{tpu_custom_call.1} parent=23 // pred_check_branch
          %276 = sbr.rel target = $region56
        $region55: #{tpu_custom_call.1} parent=23 // pred_region
          %277 = sst [smem:[#allocation10]] [#allocation25]
          %278 = sst [smem:[#allocation11]] [#allocation24]
        $region56: #{tpu_custom_call.1} parent=23 // pred_fallthru
          _
        %280 = shalt.err (0)
        %s282 = sshll.u32 %s273, 4
        %s283 = int_to_ptr.vmem [resolvable:$true] %s282
        %285 = dma.hbm_to_vmem [thread:$0]  %s272, 16, %s283, %s274
        %s286 = smul.u32 1, 1
        %s287 = sshll.u32 %s286, 4
        %288 = dma.done [#allocation3], %s287
        %s289 = sshll.u32 %s286, 4
        %290 = dma.done %s148, %s289
        %s291 = sshll.u32 %s286, 4
        %292 = dma.done %s169, %s291
        %s293 = sshll.u32 %s286, 4
        %294 = dma.done %s190, %s293
        %s295 = sshll.u32 %s286, 4
        %296 = dma.done %s211, %s295
        %s297 = sshll.u32 %s286, 4
        %298 = dma.done %s232, %s297
        %s299 = sshll.u32 %s286, 4
        %300 = dma.done %s253, %s299
        %s301 = sshll.u32 %s286, 4
        %302 = dma.done %s274, %s301
        %v303 = vld [vmem:[%s119] sm:$0xff]
        %vm304 = vcmp.ne.s32.totalorder %v303, 1
        %v305 = vsel %vm304, 1, 0
        %v306 = vcvt.s32.f32 %v305
        %v307 = vld [vmem:[#allocation2] sm:$0xff]
        %309 = vset.pattern.permute.xlu0 0
        %310 = vperm.xlu0 %309, %v306
        %v311 = vpop.permute.xlu0 %310
        %v313 = vmul.f32 %v307, %v311
        %314 = vst [vmem:[%s115] sm:$0xff] %v313
        %s315 = sand.u32 %s57, 1
        %s316 = scalar_lea.sflag [#allocation7], %s315
        %s317 = sand.u32 %s57, 1
        %s318 = smul.addr %s317, 8
        %s319 = scalar_lea.vmem [#allocation6], %s318
        // Predicated region
        $region57: #{tpu_custom_call.1} parent=23 // pred_check
          %p320 = pneg %p67
        $region58: #{tpu_custom_call.1} parent=23 // pred_check_branch
          %322 = sbr.rel (%p320) target = $region60
        $region59: #{tpu_custom_call.1} parent=23 // pred_region
          %s324 = ssub.s32 128, 128
          %325 = vsyncadd %s316, %s324
          %s326 = smul.addr %s23, 128
          %s327 = scalar_lea.hbm %s3, %s326
          %s329 = sshll.u32 %s319, 4
          %s330 = int_to_ptr.vmem [resolvable:$true] %s329
          %332 = dma.vmem_to_hbm [thread:$0]  %s330, 128, %s327, %s316
        $region60: #{tpu_custom_call.1} parent=23 // pred_fallthru
          _
      $region24: #{tpu_custom_call.1} parent=5 // pred_fallthru
        _
      %p333 = scmp.le.s32.totalorder 2, %s18
      // Predicated region
      $region61: #{tpu_custom_call.1} parent=5 // pred_check
        %p334 = pneg %p333
      $region62: #{tpu_custom_call.1} parent=5 // pred_check_branch
        %336 = sbr.rel (%p334) target = $region64
      $region63: #{tpu_custom_call.1} parent=5 // pred_region
        %s337 = ssub.s32 %s18, 2
        // Predicated region
        $region65: #{tpu_custom_call.1} parent=63 // pred_check
          %p338 = pneg %p73
        $region66: #{tpu_custom_call.1} parent=63 // pred_check_branch
          %340 = sbr.rel (%p338) target = $region68
        $region67: #{tpu_custom_call.1} parent=63 // pred_region
          %s341 = sand.u32 %s58, 1
          %s342 = scalar_lea.sflag [#allocation7], %s341
          %s343 = sand.u32 %s58, 1
          %s344 = smul.addr %s343, 8
          %s345 = scalar_lea.vmem [#allocation6], %s344
          %346 = dma.done %s342, 128
        $region68: #{tpu_custom_call.1} parent=63 // pred_fallthru
          _
      $region64: #{tpu_custom_call.1} parent=5 // pred_fallthru
        _
    $region6: #{tpu_custom_call.1} parent=1 // loop_footer
      %s22 = sadd.s32 1, %s18
    $region7: #{tpu_custom_call.1} parent=1 // loop_footer_branch
      %17 = sbr.rel target = $region3
    $region8: #{tpu_custom_call.1} parent=1 // loop_exit
      _
    %347 = vsyncpa [#allocation7], 1
    %s348 = scalar_lea.sflag [#allocation7], 1
    %349 = vsyncpa %s348, 1
  %350 = vsyncmov [#allocation3]
  %s351 = vpop.sfrf %350
  %p352 = scmp.eq.s32.totalorder %s351, 0
  %p353 = pneg %p352
  %355 = shalt.err (%p353)
  %s356 = scalar_lea.sflag [#allocation3], 1
  %357 = vsyncmov %s356
  %s358 = vpop.sfrf %357
  %p359 = scmp.eq.s32.totalorder %s358, 0
  %p360 = pneg %p359
  %362 = shalt.err (%p360)
  %s363 = scalar_lea.sflag [#allocation3], 2
  %364 = vsyncmov %s363
  %s365 = vpop.sfrf %364
  %p366 = scmp.eq.s32.totalorder %s365, 0
  %p367 = pneg %p366
  %369 = shalt.err (%p367)
  %s370 = scalar_lea.sflag [#allocation3], 3
  %371 = vsyncmov %s370
  %s372 = vpop.sfrf %371
  %p373 = scmp.eq.s32.totalorder %s372, 0
  %p374 = pneg %p373
  %376 = shalt.err (%p374)
  %s377 = scalar_lea.sflag [#allocation3], 4
  %378 = vsyncmov %s377
  %s379 = vpop.sfrf %378
  %p380 = scmp.eq.s32.totalorder %s379, 0
  %p381 = pneg %p380
  %383 = shalt.err (%p381)
  %s384 = scalar_lea.sflag [#allocation3], 5
  %385 = vsyncmov %s384
  %s386 = vpop.sfrf %385
  %p387 = scmp.eq.s32.totalorder %s386, 0
  %p388 = pneg %p387
  %390 = shalt.err (%p388)
  %s391 = scalar_lea.sflag [#allocation3], 6
  %392 = vsyncmov %s391
  %s393 = vpop.sfrf %392
  %p394 = scmp.eq.s32.totalorder %s393, 0
  %p395 = pneg %p394
  %397 = shalt.err (%p395)
  %s398 = scalar_lea.sflag [#allocation3], 7
  %399 = vsyncmov %s398
  %s400 = vpop.sfrf %399
  %p401 = scmp.eq.s32.totalorder %s400, 0
  %p402 = pneg %p401
  %404 = shalt.err (%p402)

</llo_original>
